<compile_context>
chip_gen: v7x
topology: tpu7x:2x2x1
jax: 0.10.0
libtpu: 0.0.40
codegen_flags: <defaults>
</compile_context>

<pallas_src>
import functools

import jax
import jax.numpy as jnp
from jax import lax
from jax.experimental import pallas as pl
from jax.experimental.pallas import tpu as pltpu


def _mlp_kernel(num_hidden, *refs):
    # refs = (x_ref,                                  # (in_dim, tb)  batch on lanes
    #         w_0, b_0, ..., w_{H-1}, b_{H-1},        # (out_i, in_i) / (out_i, 1)
    #         w_last, b_last,                         # (in_last, 1)  / (1, 1)
    #         out_ref)                                # (1, tb)
    x_ref = refs[0]
    out_ref = refs[-1]
    param_refs = refs[1:-1]

    h = x_ref[...]                                    # (in_dim, tb) f32
    for i in range(num_hidden):
        w = param_refs[2 * i][...]                    # (out_i, in_i) PyTorch layout
        b = param_refs[2 * i + 1][...]                # (out_i, 1)
        # (out_i, in_i) @ (in_i, tb) -> (out_i, tb): MXU N dim = lane-dense batch tile
        h = lax.dot_general(
            w, h,
            dimension_numbers=(((1,), (0,)), ((), ())),
            preferred_element_type=jnp.float32)
        h = jnp.maximum(h + b, 0.0)                   # bias + ReLU (hidden layers only)

    # Head (out_features == 1): lane-wise multiply + cheap sublane reduce.
    w_last = param_refs[-2][...]                      # (in_last, 1)
    b_last = param_refs[-1][...]                      # (1, 1)
    out_ref[...] = (jnp.sum(h * w_last, axis=0, keepdims=True)
                    + b_last).astype(out_ref.dtype)


_LANE_ALIGN = 256          # full MXU passes on v6e/v7x; 128-multiple for v5e
_SINGLE_TILE_MAX = 2048    # up to this batch: one grid step (overhead-bound regime)
_TARGET_TILE = 2048        # above: ~2K-row lane tiles


def _choose_tiling(batch):
    """Return (lane_tile, num_tiles) for the batch (lane) axis."""
    if batch <= _SINGLE_TILE_MAX:
        tb = pl.cdiv(batch, _LANE_ALIGN) * _LANE_ALIGN
        return tb, 1
    n = pl.cdiv(batch, _TARGET_TILE)
    if n % 2:
        n += 1                       # even grid length -> balanced across v7x's 2 TCs
    tb = pl.cdiv(pl.cdiv(batch, n), _LANE_ALIGN) * _LANE_ALIGN
    return tb, n


def mlp_forward(x, weights, biases):
    """Run the fused MLP kernel.

    x:       (batch, input_dim) f32
    weights: list of (out_i, in_i) f32 arrays (PyTorch nn.Linear layout)
    biases:  list of (out_i,) f32 arrays
    """
    num_hidden = len(weights) - 1
    batch, in_dim = x.shape
    out_dim = weights[-1].shape[0]                    # == 1 for this module

    tb, n_tiles = _choose_tiling(batch)
    padded = tb * n_tiles

    # Batch-on-lanes layout: activations as (features, batch), padded on lanes.
    xT = x.T
    if padded != batch:
        xT = jnp.pad(xT, ((0, 0), (0, padded - batch)))

    # Parameter packing: hidden weights keep PyTorch (out, in) layout; biases
    # become (out, 1) columns.  Head weight is a (in_last, 1) column for the
    # multiply + sublane-reduce head; head bias is (1, 1).
    flat_params = []
    for i in range(num_hidden):
        flat_params.append(jnp.asarray(weights[i]))                   # (out_i, in_i)
        flat_params.append(jnp.asarray(biases[i]).reshape(-1, 1))     # (out_i, 1)
    flat_params.append(jnp.asarray(weights[-1]).reshape(-1, 1))       # (in_last, 1)
    flat_params.append(jnp.asarray(biases[-1]).reshape(1, 1))         # (1, 1)

    # VMEM budget sanity: double-buffered x / out tiles + (conservatively
    # double-buffered) params must stay under the explicit limit (v7x-safe).
    dt = 4
    vmem_est = 2 * (in_dim * tb * dt) + 2 * (out_dim * tb * dt)
    vmem_est += 2 * sum(int(p.size) * dt for p in flat_params)
    vmem_limit = 32 * 1024 * 1024
    assert vmem_est < vmem_limit, (vmem_est, vmem_limit)

    x_spec = pl.BlockSpec((in_dim, tb), lambda i: (0, i))
    param_specs = [pl.BlockSpec(p.shape, lambda i: (0, 0)) for p in flat_params]
    out_spec = pl.BlockSpec((out_dim, tb), lambda i: (0, i))

    kernel = functools.partial(_mlp_kernel, num_hidden)

    out = pl.pallas_call(
        kernel,
        out_shape=jax.ShapeDtypeStruct((out_dim, padded), jnp.float32),
        grid=(n_tiles,),
        in_specs=[x_spec] + param_specs,
        out_specs=out_spec,
        compiler_params=pltpu.CompilerParams(
            dimension_semantics=("parallel",),
            vmem_limit_bytes=vmem_limit,
        ),
    )(xT, *flat_params)

    return out[:, :batch].T                           # back to (batch, 1)


def mlp_reference(x, weights, biases):
    h = x
    for i, (w, b) in enumerate(zip(weights, biases)):
        h = h @ w.T + b
        if i < len(weights) - 1:
            h = jnp.maximum(h, 0.0)
    return h


def _make_params(key, dims):
    weights, biases = [], []
    for i in range(len(dims) - 1):
        key, wk, bk = jax.random.split(key, 3)
        bound = 1.0 / jnp.sqrt(dims[i])               # PyTorch nn.Linear default init range
        weights.append(jax.random.uniform(
            wk, (dims[i + 1], dims[i]), minval=-bound, maxval=bound,
            dtype=jnp.float32))
        biases.append(jax.random.uniform(
            bk, (dims[i + 1],), minval=-bound, maxval=bound,
            dtype=jnp.float32))
    return key, weights, biases


if __name__ == "__main__":
    # Deterministic synthetic setup (the original script reads a CSV; here we
    # pick a plausible small input_dim and hidden sizes).
    input_dim = 19            # life-expectancy dataset has ~19 feature columns
    hidden_layers = [32, 16]  # params['hidden_layer_sizes'] stand-in
    dims = [input_dim] + hidden_layers + [1]

    key = jax.random.PRNGKey(0)
    key, weights, biases = _make_params(key, dims)

    # Small batch: single grid step, lane-padded to 256.
    key, xk = jax.random.split(key)
    x = jax.random.normal(xk, (64, input_dim), dtype=jnp.float32)
    out = mlp_forward(x, weights, biases)
    jax.block_until_ready(out)
    ref = mlp_reference(x, weights, biases)
    assert out.shape == (64, 1), out.shape
    assert jnp.allclose(out, ref, atol=1e-5, rtol=1e-5), \
        f"max err {jnp.max(jnp.abs(out - ref))}"

    # Non-multiple batch: exercises lane padding + slice-off of padded columns.
    key, xk = jax.random.split(key)
    x2 = jax.random.normal(xk, (300, input_dim), dtype=jnp.float32)
    out2 = mlp_forward(x2, weights, biases)
    jax.block_until_ready(out2)
    ref2 = mlp_reference(x2, weights, biases)
    assert out2.shape == (300, 1), out2.shape
    assert jnp.allclose(out2, ref2, atol=1e-5, rtol=1e-5), \
        f"max err {jnp.max(jnp.abs(out2 - ref2))}"

    print("KERNEL_OK")
</pallas_src>

<mosaic_0001>
module attributes {stable_mosaic.version = 11 : i64} {
  func.func @_mlp_kernel(%arg0: i32, %arg1: memref<19x256xf32, #tpu.memory_space<vmem>>, %arg2: memref<32x19xf32, #tpu.memory_space<vmem>>, %arg3: memref<32x1xf32, #tpu.memory_space<vmem>>, %arg4: memref<16x32xf32, #tpu.memory_space<vmem>>, %arg5: memref<16x1xf32, #tpu.memory_space<vmem>>, %arg6: memref<16x1xf32, #tpu.memory_space<vmem>>, %arg7: memref<1x1xf32, #tpu.memory_space<vmem>>, %arg8: memref<1x256xf32, #tpu.memory_space<vmem>>) attributes {dimension_semantics = [#tpu.dimension_semantics<parallel>], iteration_bounds = array<i64: 1>, scalar_prefetch = 0 : i64, scratch_operands = 0 : i64, tpu.core_type = #tpu.core_type<tc>, window_params = [{transform_indices = @transform_0, window_bounds = array<i64: 19, 256>}, {pipeline_mode = #tpu.pipeline_mode<synchronous>, transform_indices = @transform_1, window_bounds = array<i64: 32, 19>}, {pipeline_mode = #tpu.pipeline_mode<synchronous>, transform_indices = @transform_2, window_bounds = array<i64: 32, 1>}, {pipeline_mode = #tpu.pipeline_mode<synchronous>, transform_indices = @transform_3, window_bounds = array<i64: 16, 32>}, {pipeline_mode = #tpu.pipeline_mode<synchronous>, transform_indices = @transform_4, window_bounds = array<i64: 16, 1>}, {pipeline_mode = #tpu.pipeline_mode<synchronous>, transform_indices = @transform_5, window_bounds = array<i64: 16, 1>}, {pipeline_mode = #tpu.pipeline_mode<synchronous>, transform_indices = @transform_6, window_bounds = array<i64: 1, 1>}, {transform_indices = @transform_7, window_bounds = array<i64: 1, 256>}]} {
    %c0 = arith.constant 0 : index
    %c0_0 = arith.constant 0 : index
    %0 = vector.load %arg1[%c0, %c0_0] : memref<19x256xf32, #tpu.memory_space<vmem>>, vector<19x256xf32>
    %c0_1 = arith.constant 0 : index
    %c0_2 = arith.constant 0 : index
    %1 = vector.load %arg2[%c0_1, %c0_2] : memref<32x19xf32, #tpu.memory_space<vmem>>, vector<32x19xf32>
    %c0_3 = arith.constant 0 : index
    %c0_4 = arith.constant 0 : index
    %2 = vector.load %arg3[%c0_3, %c0_4] : memref<32x1xf32, #tpu.memory_space<vmem>>, vector<32x1xf32>
    %cst = arith.constant dense<0.000000e+00> : vector<32x256xf32>
    %3 = tpu.matmul %1, %0, %cst {dimension_numbers = #tpu.dot_dimension_numbers<[1], [0], [0], [1], [0, 0, 1, 1], [], []>} : vector<32x19xf32>, vector<19x256xf32>, vector<32x256xf32> -> vector<32x256xf32>
    %4 = vector.broadcast %2 : vector<32x1xf32> to vector<32x256xf32>
    %5 = arith.addf %3, %4 : vector<32x256xf32>
    %cst_5 = arith.constant 0.000000e+00 : f32
    %6 = vector.broadcast %cst_5 : f32 to vector<32x256xf32>
    %7 = arith.maximumf %5, %6 : vector<32x256xf32>
    %c0_6 = arith.constant 0 : index
    %c0_7 = arith.constant 0 : index
    %8 = vector.load %arg4[%c0_6, %c0_7] : memref<16x32xf32, #tpu.memory_space<vmem>>, vector<16x32xf32>
    %c0_8 = arith.constant 0 : index
    %c0_9 = arith.constant 0 : index
    %9 = vector.load %arg5[%c0_8, %c0_9] : memref<16x1xf32, #tpu.memory_space<vmem>>, vector<16x1xf32>
    %cst_10 = arith.constant dense<0.000000e+00> : vector<16x256xf32>
    %10 = tpu.matmul %8, %7, %cst_10 {dimension_numbers = #tpu.dot_dimension_numbers<[1], [0], [0], [1], [0, 0, 1, 1], [], []>} : vector<16x32xf32>, vector<32x256xf32>, vector<16x256xf32> -> vector<16x256xf32>
    %11 = vector.broadcast %9 : vector<16x1xf32> to vector<16x256xf32>
    %12 = arith.addf %10, %11 : vector<16x256xf32>
    %cst_11 = arith.constant 0.000000e+00 : f32
    %13 = vector.broadcast %cst_11 : f32 to vector<16x256xf32>
    %14 = arith.maximumf %12, %13 : vector<16x256xf32>
    %c0_12 = arith.constant 0 : index
    %c0_13 = arith.constant 0 : index
    %15 = vector.load %arg6[%c0_12, %c0_13] : memref<16x1xf32, #tpu.memory_space<vmem>>, vector<16x1xf32>
    %c0_14 = arith.constant 0 : index
    %c0_15 = arith.constant 0 : index
    %16 = vector.load %arg7[%c0_14, %c0_15] : memref<1x1xf32, #tpu.memory_space<vmem>>, vector<1x1xf32>
    %17 = vector.broadcast %15 : vector<16x1xf32> to vector<16x256xf32>
    %18 = arith.mulf %14, %17 : vector<16x256xf32>
    %cst_16 = arith.constant dense<0.000000e+00> : vector<256xf32>
    %19 = vector.multi_reduction <add>, %18, %cst_16 [0] : vector<16x256xf32> to vector<256xf32>
    %20 = vector.shape_cast %19 : vector<256xf32> to vector<1x256xf32>
    %21 = vector.broadcast %16 : vector<1x1xf32> to vector<1x256xf32>
    %22 = arith.addf %20, %21 : vector<1x256xf32>
    %c0_17 = arith.constant 0 : index
    %c0_18 = arith.constant 0 : index
    %23 = vector.load %arg8[%c0_17, %c0_18] : memref<1x256xf32, #tpu.memory_space<vmem>>, vector<1x256xf32>
    tpu.vector_store %arg8[%c0_17, %c0_18], %22 {strides = array<i32>} : memref<1x256xf32, #tpu.memory_space<vmem>>, vector<1x256xf32>,
    return
  }
  func.func @transform_0(%arg0: i32) -> (i32, i32) {
    %c0_i32 = arith.constant 0 : i32
    %c0_i32_0 = arith.constant 0 : i32
    return %c0_i32, %arg0 : i32, i32
  }
  func.func @transform_1(%arg0: i32) -> (i32, i32) {
    %c0_i32 = arith.constant 0 : i32
    %c0_i32_0 = arith.constant 0 : i32
    %c0_i32_1 = arith.constant 0 : i32
    return %c0_i32, %c0_i32_0 : i32, i32
  }
  func.func @transform_2(%arg0: i32) -> (i32, i32) {
    %c0_i32 = arith.constant 0 : i32
    %c0_i32_0 = arith.constant 0 : i32
    %c0_i32_1 = arith.constant 0 : i32
    return %c0_i32, %c0_i32_0 : i32, i32
  }
  func.func @transform_3(%arg0: i32) -> (i32, i32) {
    %c0_i32 = arith.constant 0 : i32
    %c0_i32_0 = arith.constant 0 : i32
    %c0_i32_1 = arith.constant 0 : i32
    return %c0_i32, %c0_i32_0 : i32, i32
  }
  func.func @transform_4(%arg0: i32) -> (i32, i32) {
    %c0_i32 = arith.constant 0 : i32
    %c0_i32_0 = arith.constant 0 : i32
    %c0_i32_1 = arith.constant 0 : i32
    return %c0_i32, %c0_i32_0 : i32, i32
  }
  func.func @transform_5(%arg0: i32) -> (i32, i32) {
    %c0_i32 = arith.constant 0 : i32
    %c0_i32_0 = arith.constant 0 : i32
    %c0_i32_1 = arith.constant 0 : i32
    return %c0_i32, %c0_i32_0 : i32, i32
  }
  func.func @transform_6(%arg0: i32) -> (i32, i32) {
    %c0_i32 = arith.constant 0 : i32
    %c0_i32_0 = arith.constant 0 : i32
    %c0_i32_1 = arith.constant 0 : i32
    return %c0_i32, %c0_i32_0 : i32, i32
  }
  func.func @transform_7(%arg0: i32) -> (i32, i32) {
    %c0_i32 = arith.constant 0 : i32
    %c0_i32_0 = arith.constant 0 : i32
    return %c0_i32, %arg0 : i32, i32
  }
}

</mosaic_0001>

<llo_original>
// kernel: tpu_custom_call.1
$region0: #{tpu_custom_call.1}
  #allocation0 [shape = 'u32[]', space=smem, size = 0x4, offset = 0x4, fixed_abs, tag = 'smem constant byte address 0x4 - core index']
  #allocation1 [shape = 'u32[144,128]{1,0:T(1,128)}', space=vmem, size = 0x12000, scoped, tag = 'internal scratch']
  #allocation2 [shape = 'f32[1,1]{1,0:T(1,128)S(1)}', space=vmem, size = 0x200, scoped, tag = 'scoped memory for tpu_custom_call.1']
  %s0 = inlined_call_operand.vmem [shape: f32[19,256], index: 0, kind: input, shape index: {}]
  %s1 = inlined_call_operand.vmem [shape: f32[32,19], index: 1, kind: input, shape index: {}]
  %s2 = inlined_call_operand.vmem [shape: f32[32,1], index: 2, kind: input, shape index: {}]
  %s3 = inlined_call_operand.vmem [shape: f32[16,32], index: 3, kind: input, shape index: {}]
  %s4 = inlined_call_operand.vmem [shape: f32[16,1], index: 4, kind: input, shape index: {}]
  %s5 = inlined_call_operand.vmem [shape: f32[16,1], index: 5, kind: input, shape index: {}]
  %s6 = inlined_call_operand.<no memory space> [shape: f32[1,1], index: 6, kind: input, shape index: {}]
  %s7 = inlined_call_operand.hbm [shape: f32[1,256], index: 7, kind: output, shape index: {}]
  %s8 = sld [smem:[#allocation0]]
  $region38: #{tpu_custom_call.1} parent=0
    _
  %s10 = ssub.s32 1, %s8
  %s11 = scalar_select 0, %s10, %s8
  %v12 = vstv %s6
  %13 = vst [vmem:[#allocation2] sm:$0x1] %v12
  $region1: #{tpu_custom_call.1} parent=0
    #allocation3 [shape = 'u8[1024]{0}', space=vmem, size = 0x400, scoped, tag = 'output window, operand 0, single buffered']
    #allocation4 [shape = 's32[1]{0}', space=sflag, size = 0x4, scoped, tag = 'scoped memory for tpu_custom_call.1']
    %14 = vsyncpa [#allocation4], 0
    // Predicated region
    $region2: #{tpu_custom_call.1} parent=1 // pred_check
      _
    $region3: #{tpu_custom_call.1} parent=1 // pred_check_branch
      %16 = sbr.rel (0) target = $region5
    $region4: #{tpu_custom_call.1} parent=1 // pred_region
      _
    $region5: #{tpu_custom_call.1} parent=1 // pred_fallthru
      _
    // Predicated region
    $region6: #{tpu_custom_call.1} parent=1 // pred_check
      _
    $region7: #{tpu_custom_call.1} parent=1 // pred_check_branch
      %18 = sbr.rel (0) target = $region9
    $region8: #{tpu_custom_call.1} parent=1 // pred_region
      _
    $region9: #{tpu_custom_call.1} parent=1 // pred_fallthru
      _
    // Predicated region
    $region10: #{tpu_custom_call.1} parent=1 // pred_check
      _
    $region11: #{tpu_custom_call.1} parent=1 // pred_check_branch
      %20 = sbr.rel (0) target = $region13
    $region12: #{tpu_custom_call.1} parent=1 // pred_region
      _
    $region13: #{tpu_custom_call.1} parent=1 // pred_fallthru
      _
    // Predicated region
    $region14: #{tpu_custom_call.1} parent=1 // pred_check
      _
    $region15: #{tpu_custom_call.1} parent=1 // pred_check_branch
      %22 = sbr.rel (0) target = $region17
    $region16: #{tpu_custom_call.1} parent=1 // pred_region
      _
    $region17: #{tpu_custom_call.1} parent=1 // pred_fallthru
      _
    // Predicated region
    $region18: #{tpu_custom_call.1} parent=1 // pred_check
      _
    $region19: #{tpu_custom_call.1} parent=1 // pred_check_branch
      %24 = sbr.rel (0) target = $region21
    $region20: #{tpu_custom_call.1} parent=1 // pred_region
      _
    $region21: #{tpu_custom_call.1} parent=1 // pred_fallthru
      _
    // Predicated region
    $region22: #{tpu_custom_call.1} parent=1 // pred_check
      _
    $region23: #{tpu_custom_call.1} parent=1 // pred_check_branch
      %26 = sbr.rel (0) target = $region25
    $region24: #{tpu_custom_call.1} parent=1 // pred_region
      _
    $region25: #{tpu_custom_call.1} parent=1 // pred_fallthru
      _
    // Predicated region
    $region26: #{tpu_custom_call.1} parent=1 // pred_check
      _
    $region27: #{tpu_custom_call.1} parent=1 // pred_check_branch
      %28 = sbr.rel (0) target = $region29
    $region28: #{tpu_custom_call.1} parent=1 // pred_region
      _
    $region29: #{tpu_custom_call.1} parent=1 // pred_fallthru
      _
    %v29 = vld [vmem:[%s0] sm:$0xff]
    %v30 = vld [vmem:[%s0 + $0x8] sm:$0xff]
    %v31 = vld [vmem:[%s0 + $0x10] sm:$0xff]
    %v32 = vld [vmem:[%s0 + $0x18] sm:$0xff]
    %v33 = vld [vmem:[%s0 + $0x20] sm:$0x7]
    %v34 = vld [vmem:[%s0 + $0x28] sm:$0x7]
    %v35 = vld [vmem:[%s1] sm:$0xff]
    %v36 = vld [vmem:[%s1 + $0x8] sm:$0xff]
    %v37 = vld [vmem:[%s1 + $0x10] sm:$0xff]
    %v38 = vld [vmem:[%s1 + $0x18] sm:$0xff]
    %v39 = vld [vmem:[%s2] sm:$0xff]
    %v40 = vld [vmem:[%s2 + $0x8] sm:$0xff]
    %v41 = vld [vmem:[%s2 + $0x10] sm:$0xff]
    %v42 = vld [vmem:[%s2 + $0x18] sm:$0xff]
    %44 = vset.pattern.permute.xlu0 0
    %45 = vperm.xlu0 %44, %v39
    %v46 = vpop.permute.xlu0 %45
    %49 = vset.pattern.permute.xlu0 0
    %50 = vperm.xlu0 %49, %v40
    %v51 = vpop.permute.xlu0 %50
    %54 = vset.pattern.permute.xlu0 0
    %55 = vperm.xlu0 %54, %v41
    %v56 = vpop.permute.xlu0 %55
    %59 = vset.pattern.permute.xlu0 0
    %60 = vperm.xlu0 %59, %v42
    %v61 = vpop.permute.xlu0 %60
    %vm63 = vcmask 154624
    %v65 = vsel %vm63, %v35, 0
    %v68 = vsel %vm63, %v36, 0
    %v71 = vsel %vm63, %v37, 0
    %v74 = vsel %vm63, %v38, 0
    %vm76 = vcmask 1042432
    %v78 = vsel %vm76, %v33, 0
    %v81 = vsel %vm76, %v34, 0
    %83 = vmatprep.subr.mxu0 %v30
    %84 = vmatpush1.msra.mxu0 %v29
    %85 = vmatprep.subr.mxu0 %v32
    %86 = vmatpush1.msra.mxu0 %v31
    %87 = vmatprep.subr.mxu0 %v81
    %88 = vmatpush1.msra.mxu0 %v78
    %89 = vmatprep.subr.mxu0 0.0
    %90 = vmatpush1.msra.mxu0 0.0
    %91 = vmatprep.subr.mxu0 0.0
    %92 = vmatpush1.msra.mxu0 0.0
    %93 = vmatprep.subr.mxu0 0.0
    %94 = vmatpush1.msra.mxu0 0.0
    %95 = vmatprep.subr.mxu0 0.0
    %96 = vmatpush1.msra.mxu0 0.0
    %97 = vmatprep.subr.mxu0 0.0
    %98 = vmatpush1.msra.mxu0 0.0
    %99 = vmatprep.subr.mxu0 0.0
    %100 = vmatpush1.msra.mxu0 0.0
    %101 = vmatprep.subr.mxu0 0.0
    %102 = vmatpush1.msra.mxu0 0.0
    %103 = vmatprep.subr.mxu0 0.0
    %104 = vmatpush1.msra.mxu0 0.0
    %105 = vmatprep.subr.mxu0 0.0
    %106 = vmatpush1.msra.mxu0 0.0
    %107 = vmatprep.subr.mxu0 0.0
    %108 = vmatpush1.msra.mxu0 0.0
    %109 = vmatprep.subr.mxu0 0.0
    %110 = vmatpush1.msra.mxu0 0.0
    %111 = vmatprep.subr.mxu0 0.0
    %112 = vmatpush1.msra.mxu0 0.0
    %113 = vmatprep.subr.mxu0 0.0
    %114 = vmatpush1.msra.mxu0 0.0
    %115 = vmatprep.subr.mxu0 0.0
    %116 = vmatpush1.msra.mxu0 0.0
    %117 = vmatprep.subr.mxu0 0.0
    %118 = vmatpush1.msra.mxu0 0.0
    %119 = vmatprep.subr.mxu0 0.0
    %120 = vmatpush1.msra.mxu0 0.0
    %121 = vmatprep.subr.mxu0 0.0
    %122 = vmatpush1.msra.mxu0 0.0
    %123 = vmatprep.subr.mxu0 0.0
    %124 = vmatpush1.msra.mxu0 0.0
    %125 = vmatprep.subr.mxu0 0.0
    %126 = vmatpush1.msra.mxu0 0.0
    %127 = vmatprep.subr.mxu0 0.0
    %128 = vmatpush1.msra.mxu0 0.0
    %129 = vmatprep.subr.mxu0 0.0
    %130 = vmatpush1.msra.mxu0 0.0
    %131 = vmatprep.subr.mxu0 0.0
    %132 = vmatpush1.msra.mxu0 0.0
    %133 = vmatprep.subr.mxu0 0.0
    %134 = vmatpush1.msra.mxu0 0.0
    %135 = vmatprep.subr.mxu0 0.0
    %136 = vmatpush1.msra.mxu0 0.0
    %137 = vmatprep.subr.mxu0 0.0
    %138 = vmatpush1.msra.mxu0 0.0
    %139 = vmatprep.subr.mxu0 0.0
    %140 = vmatpush1.msra.mxu0 0.0
    %141 = vmatprep.subr.mxu0 0.0
    %142 = vmatpush1.msra.mxu0 0.0
    %143 = vmatprep.subr.mxu0 0.0
    %144 = vmatpush1.msra.mxu0 0.0
    %145 = vmatprep.subr.mxu0 0.0
    %146 = vmatpush1.msra.mxu0 0.0
    %147 = vmatprep.mubr.f32.mxu0 0.0
    %148 = vmatmul.mubr.f32.gmra.mrb[0].mxu0 %v65
    %v149 = vpop.f32.mrb[0].mxu0
    %v150 = vadd.f32 %v46, %v149
    %v151 = vpop.f32.mrb[0].mxu0
    %v152 = vadd.f32 %v46, %v151
    %153 = vmatprep.mubr.f32.mxu0 0.0
    %154 = vmatmul.mubr.f32.gmra.mrb[0].mxu0 %v68
    %v155 = vpop.f32.mrb[0].mxu0
    %v156 = vadd.f32 %v51, %v155
    %v157 = vpop.f32.mrb[0].mxu0
    %v158 = vadd.f32 %v51, %v157
    %159 = vmatprep.mubr.f32.mxu0 0.0
    %160 = vmatmul.mubr.f32.gmra.mrb[0].mxu0 %v71
    %v161 = vpop.f32.mrb[0].mxu0
    %v162 = vadd.f32 %v56, %v161
    %v163 = vpop.f32.mrb[0].mxu0
    %v164 = vadd.f32 %v56, %v163
    %165 = vmatprep.mubr.f32.mxu0 0.0
    %166 = vmatmul.mubr.f32.gmra.mrb[0].mxu0 %v74
    %v167 = vpop.f32.mrb[0].mxu0
    %v168 = vadd.f32 %v61, %v167
    %v169 = vpop.f32.mrb[0].mxu0
    %v170 = vadd.f32 %v61, %v169
    %171 = vdwg.mxu0
    %v172 = vmax.f32 %v150, 0.0
    %v173 = vmax.f32 %v152, 0.0
    %v174 = vmax.f32 %v156, 0.0
    %v175 = vmax.f32 %v158, 0.0
    %v176 = vmax.f32 %v162, 0.0
    %v177 = vmax.f32 %v164, 0.0
    %v178 = vmax.f32 %v168, 0.0
    %v179 = vmax.f32 %v170, 0.0
    %v180 = vld [vmem:[%s3] sm:$0xff]
    %v181 = vld [vmem:[%s3 + $0x8] sm:$0xff]
    %v182 = vld [vmem:[%s4] sm:$0xff]
    %v183 = vld [vmem:[%s4 + $0x8] sm:$0xff]
    %185 = vset.pattern.permute.xlu0 0
    %186 = vperm.xlu0 %185, %v182
    %v187 = vpop.permute.xlu0 %186
    %190 = vset.pattern.permute.xlu0 0
    %191 = vperm.xlu0 %190, %v183
    %v192 = vpop.permute.xlu0 %191
    %vm194 = vcmask 261120
    %v196 = vsel %vm194, %v180, 0
    %v199 = vsel %vm194, %v181, 0
    %201 = vmatprep.subr.mxu0 %v173
    %202 = vmatpush1.msra.mxu0 %v172
    %203 = vmatprep.subr.mxu0 %v175
    %204 = vmatpush1.msra.mxu0 %v174
    %205 = vmatprep.subr.mxu0 %v177
    %206 = vmatpush1.msra.mxu0 %v176
    %207 = vmatprep.subr.mxu0 %v179
    %208 = vmatpush1.msra.mxu0 %v178
    %209 = vmatprep.subr.mxu0 0.0
    %210 = vmatpush1.msra.mxu0 0.0
    %211 = vmatprep.subr.mxu0 0.0
    %212 = vmatpush1.msra.mxu0 0.0
    %213 = vmatprep.subr.mxu0 0.0
    %214 = vmatpush1.msra.mxu0 0.0
    %215 = vmatprep.subr.mxu0 0.0
    %216 = vmatpush1.msra.mxu0 0.0
    %217 = vmatprep.subr.mxu0 0.0
    %218 = vmatpush1.msra.mxu0 0.0
    %219 = vmatprep.subr.mxu0 0.0
    %220 = vmatpush1.msra.mxu0 0.0
    %221 = vmatprep.subr.mxu0 0.0
    %222 = vmatpush1.msra.mxu0 0.0
    %223 = vmatprep.subr.mxu0 0.0
    %224 = vmatpush1.msra.mxu0 0.0
    %225 = vmatprep.subr.mxu0 0.0
    %226 = vmatpush1.msra.mxu0 0.0
    %227 = vmatprep.subr.mxu0 0.0
    %228 = vmatpush1.msra.mxu0 0.0
    %229 = vmatprep.subr.mxu0 0.0
    %230 = vmatpush1.msra.mxu0 0.0
    %231 = vmatprep.subr.mxu0 0.0
    %232 = vmatpush1.msra.mxu0 0.0
    %233 = vmatprep.subr.mxu0 0.0
    %234 = vmatpush1.msra.mxu0 0.0
    %235 = vmatprep.subr.mxu0 0.0
    %236 = vmatpush1.msra.mxu0 0.0
    %237 = vmatprep.subr.mxu0 0.0
    %238 = vmatpush1.msra.mxu0 0.0
    %239 = vmatprep.subr.mxu0 0.0
    %240 = vmatpush1.msra.mxu0 0.0
    %241 = vmatprep.subr.mxu0 0.0
    %242 = vmatpush1.msra.mxu0 0.0
    %243 = vmatprep.subr.mxu0 0.0
    %244 = vmatpush1.msra.mxu0 0.0
    %245 = vmatprep.subr.mxu0 0.0
    %246 = vmatpush1.msra.mxu0 0.0
    %247 = vmatprep.subr.mxu0 0.0
    %248 = vmatpush1.msra.mxu0 0.0
    %249 = vmatprep.subr.mxu0 0.0
    %250 = vmatpush1.msra.mxu0 0.0
    %251 = vmatprep.subr.mxu0 0.0
    %252 = vmatpush1.msra.mxu0 0.0
    %253 = vmatprep.subr.mxu0 0.0
    %254 = vmatpush1.msra.mxu0 0.0
    %255 = vmatprep.subr.mxu0 0.0
    %256 = vmatpush1.msra.mxu0 0.0
    %257 = vmatprep.subr.mxu0 0.0
    %258 = vmatpush1.msra.mxu0 0.0
    %259 = vmatprep.subr.mxu0 0.0
    %260 = vmatpush1.msra.mxu0 0.0
    %261 = vmatprep.subr.mxu0 0.0
    %262 = vmatpush1.msra.mxu0 0.0
    %263 = vmatprep.subr.mxu0 0.0
    %264 = vmatpush1.msra.mxu0 0.0
    %265 = vmatprep.mubr.f32.mxu0 0.0
    %266 = vmatmul.mubr.f32.gmra.mrb[0].mxu0 %v196
    %v267 = vpop.f32.mrb[0].mxu0
    %v268 = vadd.f32 %v187, %v267
    %v269 = vpop.f32.mrb[0].mxu0
    %v270 = vadd.f32 %v187, %v269
    %271 = vmatprep.mubr.f32.mxu0 0.0
    %272 = vmatmul.mubr.f32.gmra.mrb[0].mxu0 %v199
    %v273 = vpop.f32.mrb[0].mxu0
    %v274 = vadd.f32 %v192, %v273
    %v275 = vpop.f32.mrb[0].mxu0
    %v276 = vadd.f32 %v192, %v275
    %277 = vdwg.mxu0
    %v278 = vmax.f32 %v268, 0.0
    %v279 = vmax.f32 %v270, 0.0
    %v280 = vmax.f32 %v274, 0.0
    %v281 = vmax.f32 %v276, 0.0
    %v282 = vld [vmem:[%s5] sm:$0xff]
    %v283 = vld [vmem:[%s5 + $0x8] sm:$0xff]
    %v284 = vld [vmem:[#allocation2] sm:$0x1]
    %286 = vset.pattern.permute.xlu0 0
    %287 = vperm.xlu0 %286, %v282
    %v288 = vpop.permute.xlu0 %287
    %291 = vset.pattern.permute.xlu0 0
    %292 = vperm.xlu0 %291, %v283
    %v293 = vpop.permute.xlu0 %292
    %v295 = vmul.f32 %v278, %v288
    %v296 = vmul.f32 %v279, %v288
    %v297 = vmul.f32 %v280, %v293
    %v298 = vmul.f32 %v281, %v293
    %v299 = vadd.f32 %v295, %v297
    %v300 = vrot.slane %v299, 4
    %v301 = vadd.f32 %v299, %v300
    %v302 = vrot.slane %v301, 2
    %v303 = vadd.f32 %v301, %v302
    %v304 = vrot.slane %v303, 1
    %v305 = vadd.f32 %v303, %v304
    %v306 = vadd.f32 %v296, %v298
    %v307 = vrot.slane %v306, 4
    %v308 = vadd.f32 %v306, %v307
    %v309 = vrot.slane %v308, 2
    %v310 = vadd.f32 %v308, %v309
    %v311 = vrot.slane %v310, 1
    %v312 = vadd.f32 %v310, %v311
    %314 = vset.pattern.permute.xlu0 0
    %315 = vperm.xlu0 %314, %v284
    %v316 = vpop.permute.xlu0 %315
    %v318 = vlaneseq
    %v319 = vshrl.u32 %v318, 7
    %v320 = vsub.s32 0, %v319
    %v321 = vrot.slane %v316, %v320
    %v322 = vadd.f32 %v305, %v321
    %v323 = vadd.f32 %v312, %v321
    %v326 = vcombine.low %v322, %v323
    %v328 = vunpack.c.l.s4 1966171168
    %v329 = vunpack.c.0.s8 %v328
    %v330 = vlaneseq
    %v331 = vshrl.u32 %v330, 7
    %v332 = vsub.s32 %v329, %v331
    %v333 = vrot.slane %v326, %v332
    %v335 = vunpack.c.l.s4 1966171168
    %v336 = vunpack.c.0.s8 %v335
    %v337 = vlaneseq
    %v338 = vshrl.u32 %v337, 7
    %v339 = vsub.s32 %v336, %v338
    %v340 = vrot.slane %v333, %v339
    %v342 = vlaneseq
    %vm343 = vcmp.ge.s32.totalorder %v342, 0
    %vm344 = vcmp.lt.s32.totalorder %v342, 256
    %vm345 = vmand %vm343, %vm344
    %346 = vst.msk [vmem:[#allocation3] sm:$0x3] %vm345, %v340
    // Predicated region
    $region30: #{tpu_custom_call.1} parent=1 // pred_check
      _
    $region31: #{tpu_custom_call.1} parent=1 // pred_check_branch
      %348 = sbr.rel (0) target = $region33
    $region32: #{tpu_custom_call.1} parent=1 // pred_region
      %s350 = ssub.s32 32, 32
      %351 = vsyncadd [#allocation4], %s350
      %s353 = sshll.u32 [#allocation3], 4
      %s354 = int_to_ptr.vmem [resolvable:$true] %s353
      %356 = dma.vmem_to_hbm [thread:$0]  %s354, 32, %s7, [#allocation4]
    $region33: #{tpu_custom_call.1} parent=1 // pred_fallthru
      _
    // Predicated region
    $region34: #{tpu_custom_call.1} parent=1 // pred_check
      _
    $region35: #{tpu_custom_call.1} parent=1 // pred_check_branch
      %358 = sbr.rel (0) target = $region37
    $region36: #{tpu_custom_call.1} parent=1 // pred_region
      %359 = dma.done [#allocation4], 32
    $region37: #{tpu_custom_call.1} parent=1 // pred_fallthru
      _
    %360 = vsyncpa [#allocation4], 1

</llo_original>
